<compile_context>
chip_gen: v5e
topology: v5e:2x2
jax: 0.10.0
libtpu: 0.0.40
codegen_flags: <defaults>
</compile_context>

<pallas_src>
import functools

import jax
import jax.numpy as jnp
from jax import lax
from jax.experimental import pallas as pl
from jax.experimental.pallas import tpu as pltpu


def _conv3x3_elu_kernel(x_ref, w_ref, m_ref, o_ref, xp_ref, patch_ref,
                        *, B, Cin, Cout, H, W):
    """One block of B images per grid step.

    x_ref     : (B*Cin, H*W)        flattened NCHW input rows (VMEM)
    w_ref     : (Cout, 9*Cin)       conv weights, columns ordered (kh, kw, ci)
    m_ref     : (2, H*W)            0/1 column-edge masks (row 0: w-1, row 1: w+1)
    o_ref     : (B*Cout, H*W)       flattened NCHW output rows (VMEM)
    xp_ref    : (B*Cin, (H+2)*W+2)  scratch: flat zero-padded input rows
    patch_ref : (9*Cin, B*H*W)      scratch: im2col patches, spatial on lanes
    """
    HW = H * W
    PAD = (H + 2) * W + 2
    BASE = W + 1                       # flat offset of x[h=0, w=0] inside xp
    dt = x_ref.dtype

    # Flat zero-padded input: zero only the two (W+1)-long halos, then copy the
    # interior.  The halo is rewritten every step so "parallel" grid
    # partitioning across TensorCores stays correct.
    halo = jnp.zeros((B * Cin, BASE), dtype=dt)
    xp_ref[:, 0:BASE] = halo
    xp_ref[:, BASE + HW:PAD] = halo
    xp_ref[:, BASE:BASE + HW] = x_ref[...]

    # Column-edge masks (w-1 / w+1 would otherwise wrap into the neighbouring
    # row of the flattened spatial axis).
    mask_l = m_ref[0:1, :]             # zero where w == 0     (kw == 0 taps)
    mask_r = m_ref[1:2, :]             # zero where w == W - 1 (kw == 2 taps)

    # im2col, lane-dense: every write is a (Cin, H*W) full-width slab.
    #   patch[(kh*3+kw)*Cin + ci, b*HW + h*W + w] = x_pad[b, ci, h+kh-1, w+kw-1]
    for kh in range(3):
        for kw in range(3):
            t = kh * 3 + kw
            off = kh * W + kw          # == BASE + (kh-1)*W + (kw-1)
            for b in range(B):
                v = xp_ref[b * Cin:(b + 1) * Cin, off:off + HW]
                if kw == 0:
                    v = v * mask_l
                elif kw == 2:
                    v = v * mask_r
                patch_ref[t * Cin:(t + 1) * Cin, b * HW:(b + 1) * HW] = v

    # Single fused MXU matmul: (Cout, 9*Cin) @ (9*Cin, B*H*W), native operand
    # dtype, f32 accumulation.
    acc = lax.dot_general(
        w_ref[...], patch_ref[...],
        dimension_numbers=(((1,), (0,)), ((), ())),
        preferred_element_type=jnp.float32)

    # ELU (alpha = 1): x if x > 0 else exp(x) - 1, exp argument clamped to <= 0.
    # (exp(min(x,0)) - 1 instead of expm1: abs error ~6e-8 near 0; documented.)
    neg = jnp.exp(jnp.minimum(acc, 0.0)) - 1.0
    out = jnp.where(acc > 0, acc, neg).astype(o_ref.dtype)

    # Lane-dense output stores: one (Cout, H*W) slab per image; the lane slices
    # start at multiples of H*W (a 128-multiple here), so no masked stores.
    for b in range(B):
        o_ref[b * Cout:(b + 1) * Cout, :] = out[:, b * HW:(b + 1) * HW]


def _pick_batch_block(N, Cin, Cout, H, W, itemsize, budget_bytes):
    """Largest divisor of N whose per-step VMEM footprint fits the budget."""
    HW = H * W
    PAD = (H + 2) * W + 2

    def footprint(B):
        xin = B * Cin * HW
        out = B * Cout * HW
        xp = B * Cin * PAD
        patch = 9 * Cin * B * HW
        small = Cout * 9 * Cin + 2 * HW            # weights + masks
        # input / output blocks are double-buffered by the Pallas pipeline.
        return (2 * (xin + out) + 2 * small + xp + patch) * itemsize

    candidates = [b for b in range(N, 0, -1)
                  if N % b == 0
                  and (b == N or ((b * Cin) % 8 == 0 and (b * Cout) % 8 == 0))]
    for b in candidates:                            # largest first
        if footprint(b) <= budget_bytes:
            return b
    return candidates[-1]


def conv_block(x_nchw, weight, *, batch_block=None,
               vmem_limit_bytes=32 * 1024 * 1024):
    """x_nchw: (N, Cin, H, W); weight: (Cout, Cin, 3, 3) — PyTorch conventions."""
    N, Cin, H, W = x_nchw.shape
    Cout = weight.shape[0]
    assert weight.shape == (Cout, Cin, 3, 3)
    HW = H * W
    PAD = (H + 2) * W + 2
    dtype = x_nchw.dtype

    if batch_block is None:
        # Conservative budget that fits v7x's 64 MiB VMEM with headroom; raise
        # both the budget and vmem_limit_bytes toward ~64-100 MiB on v5e/v6e
        # (128 MiB physical) for large shapes.
        batch_block = _pick_batch_block(N, Cin, Cout, H, W,
                                        jnp.dtype(dtype).itemsize,
                                        budget_bytes=24 * 1024 * 1024)
    B = batch_block
    assert N % B == 0

    # Free row-major reshapes — no transpose / pad HBM passes in the wrapper.
    x2d = x_nchw.reshape(N * Cin, HW)
    # Weight columns ordered (kh, kw, ci) to match the im2col patch rows.
    w2d = jnp.transpose(weight, (0, 2, 3, 1)).reshape(Cout, 9 * Cin)
    # 0/1 column-edge masks (grid-constant input, 2*H*W elements).
    col = jnp.arange(HW, dtype=jnp.int32) % W
    masks = jnp.stack([col != 0, col != (W - 1)]).astype(dtype)     # (2, HW)

    kernel = functools.partial(_conv3x3_elu_kernel,
                               B=B, Cin=Cin, Cout=Cout, H=H, W=W)

    out2d = pl.pallas_call(
        kernel,
        out_shape=jax.ShapeDtypeStruct((N * Cout, HW), dtype),
        grid_spec=pltpu.PrefetchScalarGridSpec(
            num_scalar_prefetch=0,
            grid=(N // B,),
            in_specs=[
                pl.BlockSpec((B * Cin, HW), lambda n: (n, 0)),
                # Grid-constant; tiny here, so the default double buffer is
                # irrelevant (pl.Buffered(1) only matters once Cout*9*Cin grows).
                pl.BlockSpec((Cout, 9 * Cin), lambda n: (0, 0)),
                pl.BlockSpec((2, HW), lambda n: (0, 0)),
            ],
            out_specs=pl.BlockSpec((B * Cout, HW), lambda n: (n, 0)),
            scratch_shapes=[
                pltpu.VMEM((B * Cin, PAD), dtype),       # flat padded input
                pltpu.VMEM((9 * Cin, B * HW), dtype),    # im2col patches
            ]),
        compiler_params=pltpu.CompilerParams(
            dimension_semantics=("parallel",),
            vmem_limit_bytes=vmem_limit_bytes),
    )(x2d, w2d, masks)

    # Free reshape: (N*Cout, H*W) is already NCHW row-major order.
    return out2d.reshape(N, Cout, H, W)


def reference_conv_block(x_nchw, weight):
    """Pure-JAX reference (same semantics as the PyTorch forward)."""
    y = lax.conv_general_dilated(
        x_nchw, weight,
        window_strides=(1, 1), padding=((1, 1), (1, 1)),
        dimension_numbers=("NCHW", "OIHW", "NCHW"))
    return jnp.where(y > 0, y, jnp.expm1(y))


if __name__ == "__main__":
    key = jax.random.PRNGKey(0)
    k_x, k_w = jax.random.split(key)

    N, Cin, H, W = 2, 4, 16, 16
    Cout = 8

    x = jax.random.normal(k_x, (N, Cin, H, W), dtype=jnp.float32)
    # Deterministic init mimicking nn.Conv2d default (kaiming-uniform bound).
    fan_in = Cin * 3 * 3
    bound = (1.0 / fan_in) ** 0.5
    weight = jax.random.uniform(k_w, (Cout, Cin, 3, 3), dtype=jnp.float32,
                                minval=-bound, maxval=bound)

    out = conv_block(x, weight)
    out = jax.block_until_ready(out)

    ref = reference_conv_block(x, weight)
    assert out.shape == (N, Cout, H, W)
    assert jnp.allclose(out, ref, atol=1e-5, rtol=1e-5)

    print("KERNEL_OK")
</pallas_src>

<mosaic_0001>
module attributes {stable_mosaic.version = 11 : i64} {
  func.func @_conv3x3_elu_kernel(%arg0: i32, %arg1: memref<8x256xf32, #tpu.memory_space<vmem>>, %arg2: memref<8x36xf32, #tpu.memory_space<vmem>>, %arg3: memref<2x256xf32, #tpu.memory_space<vmem>>, %arg4: memref<16x256xf32, #tpu.memory_space<vmem>>, %arg5: memref<8x290xf32, #tpu.memory_space<vmem>>, %arg6: memref<36x512xf32, #tpu.memory_space<vmem>>) attributes {dimension_semantics = [#tpu.dimension_semantics<parallel>], iteration_bounds = array<i64: 1>, scalar_prefetch = 0 : i64, scratch_operands = 2 : i64, tpu.core_type = #tpu.core_type<tc>, window_params = [{transform_indices = @transform_0, window_bounds = array<i64: 8, 256>}, {pipeline_mode = #tpu.pipeline_mode<synchronous>, transform_indices = @transform_1, window_bounds = array<i64: 8, 36>}, {pipeline_mode = #tpu.pipeline_mode<synchronous>, transform_indices = @transform_2, window_bounds = array<i64: 2, 256>}, {transform_indices = @transform_3, window_bounds = array<i64: 16, 256>}]} {
    %cst = arith.constant 0.000000e+00 : f32
    %0 = vector.broadcast %cst : f32 to vector<8x17xf32>
    %c0 = arith.constant 0 : index
    %c0_0 = arith.constant 0 : index
    %1 = vector.load %arg5[%c0, %c0_0] : memref<8x290xf32, #tpu.memory_space<vmem>>, vector<8x17xf32>
    tpu.vector_store %arg5[%c0, %c0_0], %0 {strides = array<i32>} : memref<8x290xf32, #tpu.memory_space<vmem>>, vector<8x17xf32>,
    %c0_1 = arith.constant 0 : index
    %c273 = arith.constant 273 : index
    %2 = vector.load %arg5[%c0_1, %c273] : memref<8x290xf32, #tpu.memory_space<vmem>>, vector<8x17xf32>
    tpu.vector_store %arg5[%c0_1, %c273], %0 {strides = array<i32>} : memref<8x290xf32, #tpu.memory_space<vmem>>, vector<8x17xf32>,
    %c0_2 = arith.constant 0 : index
    %c0_3 = arith.constant 0 : index
    %3 = vector.load %arg1[%c0_2, %c0_3] : memref<8x256xf32, #tpu.memory_space<vmem>>, vector<8x256xf32>
    %c0_4 = arith.constant 0 : index
    %c17 = arith.constant 17 : index
    %4 = vector.load %arg5[%c0_4, %c17] : memref<8x290xf32, #tpu.memory_space<vmem>>, vector<8x256xf32>
    tpu.vector_store %arg5[%c0_4, %c17], %3 {strides = array<i32>} : memref<8x290xf32, #tpu.memory_space<vmem>>, vector<8x256xf32>,
    %c0_5 = arith.constant 0 : index
    %c0_6 = arith.constant 0 : index
    %5 = vector.load %arg3[%c0_5, %c0_6] : memref<2x256xf32, #tpu.memory_space<vmem>>, vector<1x256xf32>
    %c1 = arith.constant 1 : index
    %c0_7 = arith.constant 0 : index
    %6 = vector.load %arg3[%c1, %c0_7] : memref<2x256xf32, #tpu.memory_space<vmem>>, vector<1x256xf32>
    %c0_8 = arith.constant 0 : index
    %c0_9 = arith.constant 0 : index
    %7 = vector.load %arg5[%c0_8, %c0_9] : memref<8x290xf32, #tpu.memory_space<vmem>>, vector<4x256xf32>
    %8 = vector.broadcast %5 : vector<1x256xf32> to vector<4x256xf32>
    %9 = arith.mulf %7, %8 : vector<4x256xf32>
    %c0_10 = arith.constant 0 : index
    %c0_11 = arith.constant 0 : index
    %10 = vector.load %arg6[%c0_10, %c0_11] : memref<36x512xf32, #tpu.memory_space<vmem>>, vector<4x256xf32>
    tpu.vector_store %arg6[%c0_10, %c0_11], %9 {strides = array<i32>} : memref<36x512xf32, #tpu.memory_space<vmem>>, vector<4x256xf32>,
    %c4 = arith.constant 4 : index
    %c0_12 = arith.constant 0 : index
    %11 = vector.load %arg5[%c4, %c0_12] : memref<8x290xf32, #tpu.memory_space<vmem>>, vector<4x256xf32>
    %12 = vector.broadcast %5 : vector<1x256xf32> to vector<4x256xf32>
    %13 = arith.mulf %11, %12 : vector<4x256xf32>
    %c0_13 = arith.constant 0 : index
    %c256 = arith.constant 256 : index
    %14 = vector.load %arg6[%c0_13, %c256] : memref<36x512xf32, #tpu.memory_space<vmem>>, vector<4x256xf32>
    tpu.vector_store %arg6[%c0_13, %c256], %13 {strides = array<i32>} : memref<36x512xf32, #tpu.memory_space<vmem>>, vector<4x256xf32>,
    %c0_14 = arith.constant 0 : index
    %c1_15 = arith.constant 1 : index
    %15 = vector.load %arg5[%c0_14, %c1_15] : memref<8x290xf32, #tpu.memory_space<vmem>>, vector<4x256xf32>
    %c4_16 = arith.constant 4 : index
    %c0_17 = arith.constant 0 : index
    %16 = vector.load %arg6[%c4_16, %c0_17] : memref<36x512xf32, #tpu.memory_space<vmem>>, vector<4x256xf32>
    tpu.vector_store %arg6[%c4_16, %c0_17], %15 {strides = array<i32>} : memref<36x512xf32, #tpu.memory_space<vmem>>, vector<4x256xf32>,
    %c4_18 = arith.constant 4 : index
    %c1_19 = arith.constant 1 : index
    %17 = vector.load %arg5[%c4_18, %c1_19] : memref<8x290xf32, #tpu.memory_space<vmem>>, vector<4x256xf32>
    %c4_20 = arith.constant 4 : index
    %c256_21 = arith.constant 256 : index
    %18 = vector.load %arg6[%c4_20, %c256_21] : memref<36x512xf32, #tpu.memory_space<vmem>>, vector<4x256xf32>
    tpu.vector_store %arg6[%c4_20, %c256_21], %17 {strides = array<i32>} : memref<36x512xf32, #tpu.memory_space<vmem>>, vector<4x256xf32>,
    %c0_22 = arith.constant 0 : index
    %c2 = arith.constant 2 : index
    %19 = vector.load %arg5[%c0_22, %c2] : memref<8x290xf32, #tpu.memory_space<vmem>>, vector<4x256xf32>
    %20 = vector.broadcast %6 : vector<1x256xf32> to vector<4x256xf32>
    %21 = arith.mulf %19, %20 : vector<4x256xf32>
    %c8 = arith.constant 8 : index
    %c0_23 = arith.constant 0 : index
    %22 = vector.load %arg6[%c8, %c0_23] : memref<36x512xf32, #tpu.memory_space<vmem>>, vector<4x256xf32>
    tpu.vector_store %arg6[%c8, %c0_23], %21 {strides = array<i32>} : memref<36x512xf32, #tpu.memory_space<vmem>>, vector<4x256xf32>,
    %c4_24 = arith.constant 4 : index
    %c2_25 = arith.constant 2 : index
    %23 = vector.load %arg5[%c4_24, %c2_25] : memref<8x290xf32, #tpu.memory_space<vmem>>, vector<4x256xf32>
    %24 = vector.broadcast %6 : vector<1x256xf32> to vector<4x256xf32>
    %25 = arith.mulf %23, %24 : vector<4x256xf32>
    %c8_26 = arith.constant 8 : index
    %c256_27 = arith.constant 256 : index
    %26 = vector.load %arg6[%c8_26, %c256_27] : memref<36x512xf32, #tpu.memory_space<vmem>>, vector<4x256xf32>
    tpu.vector_store %arg6[%c8_26, %c256_27], %25 {strides = array<i32>} : memref<36x512xf32, #tpu.memory_space<vmem>>, vector<4x256xf32>,
    %c0_28 = arith.constant 0 : index
    %c16 = arith.constant 16 : index
    %27 = vector.load %arg5[%c0_28, %c16] : memref<8x290xf32, #tpu.memory_space<vmem>>, vector<4x256xf32>
    %28 = vector.broadcast %5 : vector<1x256xf32> to vector<4x256xf32>
    %29 = arith.mulf %27, %28 : vector<4x256xf32>
    %c12 = arith.constant 12 : index
    %c0_29 = arith.constant 0 : index
    %30 = vector.load %arg6[%c12, %c0_29] : memref<36x512xf32, #tpu.memory_space<vmem>>, vector<4x256xf32>
    tpu.vector_store %arg6[%c12, %c0_29], %29 {strides = array<i32>} : memref<36x512xf32, #tpu.memory_space<vmem>>, vector<4x256xf32>,
    %c4_30 = arith.constant 4 : index
    %c16_31 = arith.constant 16 : index
    %31 = vector.load %arg5[%c4_30, %c16_31] : memref<8x290xf32, #tpu.memory_space<vmem>>, vector<4x256xf32>
    %32 = vector.broadcast %5 : vector<1x256xf32> to vector<4x256xf32>
    %33 = arith.mulf %31, %32 : vector<4x256xf32>
    %c12_32 = arith.constant 12 : index
    %c256_33 = arith.constant 256 : index
    %34 = vector.load %arg6[%c12_32, %c256_33] : memref<36x512xf32, #tpu.memory_space<vmem>>, vector<4x256xf32>
    tpu.vector_store %arg6[%c12_32, %c256_33], %33 {strides = array<i32>} : memref<36x512xf32, #tpu.memory_space<vmem>>, vector<4x256xf32>,
    %c0_34 = arith.constant 0 : index
    %c17_35 = arith.constant 17 : index
    %35 = vector.load %arg5[%c0_34, %c17_35] : memref<8x290xf32, #tpu.memory_space<vmem>>, vector<4x256xf32>
    %c16_36 = arith.constant 16 : index
    %c0_37 = arith.constant 0 : index
    %36 = vector.load %arg6[%c16_36, %c0_37] : memref<36x512xf32, #tpu.memory_space<vmem>>, vector<4x256xf32>
    tpu.vector_store %arg6[%c16_36, %c0_37], %35 {strides = array<i32>} : memref<36x512xf32, #tpu.memory_space<vmem>>, vector<4x256xf32>,
    %c4_38 = arith.constant 4 : index
    %c17_39 = arith.constant 17 : index
    %37 = vector.load %arg5[%c4_38, %c17_39] : memref<8x290xf32, #tpu.memory_space<vmem>>, vector<4x256xf32>
    %c16_40 = arith.constant 16 : index
    %c256_41 = arith.constant 256 : index
    %38 = vector.load %arg6[%c16_40, %c256_41] : memref<36x512xf32, #tpu.memory_space<vmem>>, vector<4x256xf32>
    tpu.vector_store %arg6[%c16_40, %c256_41], %37 {strides = array<i32>} : memref<36x512xf32, #tpu.memory_space<vmem>>, vector<4x256xf32>,
    %c0_42 = arith.constant 0 : index
    %c18 = arith.constant 18 : index
    %39 = vector.load %arg5[%c0_42, %c18] : memref<8x290xf32, #tpu.memory_space<vmem>>, vector<4x256xf32>
    %40 = vector.broadcast %6 : vector<1x256xf32> to vector<4x256xf32>
    %41 = arith.mulf %39, %40 : vector<4x256xf32>
    %c20 = arith.constant 20 : index
    %c0_43 = arith.constant 0 : index
    %42 = vector.load %arg6[%c20, %c0_43] : memref<36x512xf32, #tpu.memory_space<vmem>>, vector<4x256xf32>
    tpu.vector_store %arg6[%c20, %c0_43], %41 {strides = array<i32>} : memref<36x512xf32, #tpu.memory_space<vmem>>, vector<4x256xf32>,
    %c4_44 = arith.constant 4 : index
    %c18_45 = arith.constant 18 : index
    %43 = vector.load %arg5[%c4_44, %c18_45] : memref<8x290xf32, #tpu.memory_space<vmem>>, vector<4x256xf32>
    %44 = vector.broadcast %6 : vector<1x256xf32> to vector<4x256xf32>
    %45 = arith.mulf %43, %44 : vector<4x256xf32>
    %c20_46 = arith.constant 20 : index
    %c256_47 = arith.constant 256 : index
    %46 = vector.load %arg6[%c20_46, %c256_47] : memref<36x512xf32, #tpu.memory_space<vmem>>, vector<4x256xf32>
    tpu.vector_store %arg6[%c20_46, %c256_47], %45 {strides = array<i32>} : memref<36x512xf32, #tpu.memory_space<vmem>>, vector<4x256xf32>,
    %c0_48 = arith.constant 0 : index
    %c32 = arith.constant 32 : index
    %47 = vector.load %arg5[%c0_48, %c32] : memref<8x290xf32, #tpu.memory_space<vmem>>, vector<4x256xf32>
    %48 = vector.broadcast %5 : vector<1x256xf32> to vector<4x256xf32>
    %49 = arith.mulf %47, %48 : vector<4x256xf32>
    %c24 = arith.constant 24 : index
    %c0_49 = arith.constant 0 : index
    %50 = vector.load %arg6[%c24, %c0_49] : memref<36x512xf32, #tpu.memory_space<vmem>>, vector<4x256xf32>
    tpu.vector_store %arg6[%c24, %c0_49], %49 {strides = array<i32>} : memref<36x512xf32, #tpu.memory_space<vmem>>, vector<4x256xf32>,
    %c4_50 = arith.constant 4 : index
    %c32_51 = arith.constant 32 : index
    %51 = vector.load %arg5[%c4_50, %c32_51] : memref<8x290xf32, #tpu.memory_space<vmem>>, vector<4x256xf32>
    %52 = vector.broadcast %5 : vector<1x256xf32> to vector<4x256xf32>
    %53 = arith.mulf %51, %52 : vector<4x256xf32>
    %c24_52 = arith.constant 24 : index
    %c256_53 = arith.constant 256 : index
    %54 = vector.load %arg6[%c24_52, %c256_53] : memref<36x512xf32, #tpu.memory_space<vmem>>, vector<4x256xf32>
    tpu.vector_store %arg6[%c24_52, %c256_53], %53 {strides = array<i32>} : memref<36x512xf32, #tpu.memory_space<vmem>>, vector<4x256xf32>,
    %c0_54 = arith.constant 0 : index
    %c33 = arith.constant 33 : index
    %55 = vector.load %arg5[%c0_54, %c33] : memref<8x290xf32, #tpu.memory_space<vmem>>, vector<4x256xf32>
    %c28 = arith.constant 28 : index
    %c0_55 = arith.constant 0 : index
    %56 = vector.load %arg6[%c28, %c0_55] : memref<36x512xf32, #tpu.memory_space<vmem>>, vector<4x256xf32>
    tpu.vector_store %arg6[%c28, %c0_55], %55 {strides = array<i32>} : memref<36x512xf32, #tpu.memory_space<vmem>>, vector<4x256xf32>,
    %c4_56 = arith.constant 4 : index
    %c33_57 = arith.constant 33 : index
    %57 = vector.load %arg5[%c4_56, %c33_57] : memref<8x290xf32, #tpu.memory_space<vmem>>, vector<4x256xf32>
    %c28_58 = arith.constant 28 : index
    %c256_59 = arith.constant 256 : index
    %58 = vector.load %arg6[%c28_58, %c256_59] : memref<36x512xf32, #tpu.memory_space<vmem>>, vector<4x256xf32>
    tpu.vector_store %arg6[%c28_58, %c256_59], %57 {strides = array<i32>} : memref<36x512xf32, #tpu.memory_space<vmem>>, vector<4x256xf32>,
    %c0_60 = arith.constant 0 : index
    %c34 = arith.constant 34 : index
    %59 = vector.load %arg5[%c0_60, %c34] : memref<8x290xf32, #tpu.memory_space<vmem>>, vector<4x256xf32>
    %60 = vector.broadcast %6 : vector<1x256xf32> to vector<4x256xf32>
    %61 = arith.mulf %59, %60 : vector<4x256xf32>
    %c32_61 = arith.constant 32 : index
    %c0_62 = arith.constant 0 : index
    %62 = vector.load %arg6[%c32_61, %c0_62] : memref<36x512xf32, #tpu.memory_space<vmem>>, vector<4x256xf32>
    tpu.vector_store %arg6[%c32_61, %c0_62], %61 {strides = array<i32>} : memref<36x512xf32, #tpu.memory_space<vmem>>, vector<4x256xf32>,
    %c4_63 = arith.constant 4 : index
    %c34_64 = arith.constant 34 : index
    %63 = vector.load %arg5[%c4_63, %c34_64] : memref<8x290xf32, #tpu.memory_space<vmem>>, vector<4x256xf32>
    %64 = vector.broadcast %6 : vector<1x256xf32> to vector<4x256xf32>
    %65 = arith.mulf %63, %64 : vector<4x256xf32>
    %c32_65 = arith.constant 32 : index
    %c256_66 = arith.constant 256 : index
    %66 = vector.load %arg6[%c32_65, %c256_66] : memref<36x512xf32, #tpu.memory_space<vmem>>, vector<4x256xf32>
    tpu.vector_store %arg6[%c32_65, %c256_66], %65 {strides = array<i32>} : memref<36x512xf32, #tpu.memory_space<vmem>>, vector<4x256xf32>,
    %c0_67 = arith.constant 0 : index
    %c0_68 = arith.constant 0 : index
    %67 = vector.load %arg2[%c0_67, %c0_68] : memref<8x36xf32, #tpu.memory_space<vmem>>, vector<8x36xf32>
    %c0_69 = arith.constant 0 : index
    %c0_70 = arith.constant 0 : index
    %68 = vector.load %arg6[%c0_69, %c0_70] : memref<36x512xf32, #tpu.memory_space<vmem>>, vector<36x512xf32>
    %cst_71 = arith.constant dense<0.000000e+00> : vector<8x512xf32>
    %69 = tpu.matmul %67, %68, %cst_71 {dimension_numbers = #tpu.dot_dimension_numbers<[1], [0], [0], [1], [0, 0, 1, 1], [], []>} : vector<8x36xf32>, vector<36x512xf32>, vector<8x512xf32> -> vector<8x512xf32>
    %cst_72 = arith.constant 0.000000e+00 : f32
    %70 = vector.broadcast %cst_72 : f32 to vector<8x512xf32>
    %71 = arith.minimumf %69, %70 : vector<8x512xf32>
    %72 = math.exp %71 : vector<8x512xf32>
    %cst_73 = arith.constant 1.000000e+00 : f32
    %73 = vector.broadcast %cst_73 : f32 to vector<8x512xf32>
    %74 = arith.subf %72, %73 : vector<8x512xf32>
    %cst_74 = arith.constant 0.000000e+00 : f32
    %75 = vector.broadcast %cst_74 : f32 to vector<8x512xf32>
    %76 = arith.cmpf ogt, %69, %75 : vector<8x512xf32>
    %77 = arith.select %76, %69, %74 : vector<8x512xi1>, vector<8x512xf32>
    %78 = vector.extract_strided_slice %77 {offsets = [0, 0], sizes = [8, 256], strides = [1, 1]} : vector<8x512xf32> to vector<8x256xf32>
    %c0_75 = arith.constant 0 : index
    %c0_76 = arith.constant 0 : index
    %79 = vector.load %arg4[%c0_75, %c0_76] : memref<16x256xf32, #tpu.memory_space<vmem>>, vector<8x256xf32>
    tpu.vector_store %arg4[%c0_75, %c0_76], %78 {strides = array<i32>} : memref<16x256xf32, #tpu.memory_space<vmem>>, vector<8x256xf32>,
    %80 = vector.extract_strided_slice %77 {offsets = [0, 256], sizes = [8, 256], strides = [1, 1]} : vector<8x512xf32> to vector<8x256xf32>
    %c8_77 = arith.constant 8 : index
    %c0_78 = arith.constant 0 : index
    %81 = vector.load %arg4[%c8_77, %c0_78] : memref<16x256xf32, #tpu.memory_space<vmem>>, vector<8x256xf32>
    tpu.vector_store %arg4[%c8_77, %c0_78], %80 {strides = array<i32>} : memref<16x256xf32, #tpu.memory_space<vmem>>, vector<8x256xf32>,
    return
  }
  func.func @transform_0(%arg0: i32) -> (i32, i32) {
    %c0_i32 = arith.constant 0 : i32
    %c0_i32_0 = arith.constant 0 : i32
    return %arg0, %c0_i32 : i32, i32
  }
  func.func @transform_1(%arg0: i32) -> (i32, i32) {
    %c0_i32 = arith.constant 0 : i32
    %c0_i32_0 = arith.constant 0 : i32
    %c0_i32_1 = arith.constant 0 : i32
    return %c0_i32, %c0_i32_0 : i32, i32
  }
  func.func @transform_2(%arg0: i32) -> (i32, i32) {
    %c0_i32 = arith.constant 0 : i32
    %c0_i32_0 = arith.constant 0 : i32
    %c0_i32_1 = arith.constant 0 : i32
    return %c0_i32, %c0_i32_0 : i32, i32
  }
  func.func @transform_3(%arg0: i32) -> (i32, i32) {
    %c0_i32 = arith.constant 0 : i32
    %c0_i32_0 = arith.constant 0 : i32
    return %arg0, %c0_i32 : i32, i32
  }
}

</mosaic_0001>

<llo_original>
// kernel: tpu_custom_call.1
$region0: #{tpu_custom_call.1}
  #allocation0 [shape = 'u32[]', space=smem, size = 0x4, offset = 0x4, fixed_abs, tag = 'smem constant byte address 0x4 - core index']
  #allocation1 [shape = 'u32[72,128]{1,0:T(1,128)}', space=vmem, size = 0x9000, scoped, tag = 'internal scratch']
  #allocation2 [shape = 'f32[8,290]{1,0:T(8,128)}', space=vmem, size = 0x3000, scoped, tag = 'scratch operand']
  #allocation3 [shape = 'f32[36,512]{1,0:T(8,128)}', space=vmem, size = 0x14000, scoped, tag = 'scratch operand']
  %s0 = inlined_call_operand.hbm [shape: f32[8,256], index: 0, kind: input, shape index: {}]
  %s1 = inlined_call_operand.hbm [shape: f32[8,36], index: 1, kind: input, shape index: {}]
  %s2 = inlined_call_operand.hbm [shape: f32[2,256], index: 2, kind: input, shape index: {}]
  %s3 = inlined_call_operand.hbm [shape: f32[16,256], index: 3, kind: output, shape index: {}]
  %s4 = sld [smem:[#allocation0]]
  $region34: #{tpu_custom_call.1} parent=0
    _
  %s6 = ssub.s32 1, %s4
  %s7 = scalar_select 0, %s6, %s4
  $region1: #{tpu_custom_call.1} parent=0
    #allocation4 [shape = 'u8[8192]{0}', space=vmem, size = 0x2000, scoped, tag = 'input window, operand 0, single buffered']
    #allocation5 [shape = 's32[1]{0}', space=sflag, size = 0x4, scoped, tag = 'scoped memory for tpu_custom_call.1']
    #allocation6 [shape = 's32[1]{0}', space=sflag, size = 0x4, scoped, tag = 'scoped memory for tpu_custom_call.1']
    #allocation7 [shape = 'u8[4096]{0}', space=vmem, size = 0x1000, scoped, tag = 'input window, operand 1, single buffered']
    #allocation8 [shape = 's32[1]{0}', space=sflag, size = 0x4, scoped, tag = 'scoped memory for tpu_custom_call.1']
    #allocation9 [shape = 'u8[2048]{0}', space=vmem, size = 0x800, scoped, tag = 'input window, operand 2, single buffered']
    #allocation10 [shape = 'u8[16384]{0}', space=vmem, size = 0x4000, scoped, tag = 'output window, operand 0, single buffered']
    %8 = vsyncpa [#allocation5], 0
    %9 = vsyncpa [#allocation8], 0
    %10 = vsyncpa [#allocation6], 0
    // Predicated region
    $region2: #{tpu_custom_call.1} parent=1 // pred_check
      _
    $region3: #{tpu_custom_call.1} parent=1 // pred_check_branch
      %12 = sbr.rel (0) target = $region5
    $region4: #{tpu_custom_call.1} parent=1 // pred_region
      %14 = vsyncadd [#allocation5], 0
      %s16 = sshll.u32 %s0, 4
      %s17 = int_to_ptr.hbm [resolvable:$true] %s16
      %s18 = sshll.u32 [#allocation4], 4
      %s19 = int_to_ptr.vmem [resolvable:$true] %s18
      %21 = dma.hbm_to_vmem [thread:$0]  %s17, 256, %s19, [#allocation5]
    $region5: #{tpu_custom_call.1} parent=1 // pred_fallthru
      _
    // Predicated region
    $region6: #{tpu_custom_call.1} parent=1 // pred_check
      _
    $region7: #{tpu_custom_call.1} parent=1 // pred_check_branch
      %23 = sbr.rel (0) target = $region9
    $region8: #{tpu_custom_call.1} parent=1 // pred_region
      %25 = vsyncadd [#allocation8], 0
      %s27 = sshll.u32 %s1, 4
      %s28 = int_to_ptr.hbm [resolvable:$true] %s27
      %s29 = sshll.u32 [#allocation7], 4
      %s30 = int_to_ptr.vmem [resolvable:$true] %s29
      %32 = dma.hbm_to_vmem [thread:$0]  %s28, 128, %s30, [#allocation8]
    $region9: #{tpu_custom_call.1} parent=1 // pred_fallthru
      _
    // Predicated region
    $region10: #{tpu_custom_call.1} parent=1 // pred_check
      _
    $region11: #{tpu_custom_call.1} parent=1 // pred_check_branch
      %34 = sbr.rel (0) target = $region13
    $region12: #{tpu_custom_call.1} parent=1 // pred_region
      %36 = vsyncadd [#allocation8], 0
      %s38 = sshll.u32 %s2, 4
      %s39 = int_to_ptr.hbm [resolvable:$true] %s38
      %s40 = sshll.u32 [#allocation9], 4
      %s41 = int_to_ptr.vmem [resolvable:$true] %s40
      %43 = dma.hbm_to_vmem [thread:$0]  %s39, 64, %s41, [#allocation8]
    $region13: #{tpu_custom_call.1} parent=1 // pred_fallthru
      _
    // Predicated region
    $region14: #{tpu_custom_call.1} parent=1 // pred_check
      _
    $region15: #{tpu_custom_call.1} parent=1 // pred_check_branch
      %45 = sbr.rel (0) target = $region17
    $region16: #{tpu_custom_call.1} parent=1 // pred_region
      %47 = dma.done [#allocation5], 256
    $region17: #{tpu_custom_call.1} parent=1 // pred_fallthru
      _
    // Predicated region
    $region18: #{tpu_custom_call.1} parent=1 // pred_check
      _
    $region19: #{tpu_custom_call.1} parent=1 // pred_check_branch
      %49 = sbr.rel (0) target = $region21
    $region20: #{tpu_custom_call.1} parent=1 // pred_region
      %51 = dma.done [#allocation8], 128
    $region21: #{tpu_custom_call.1} parent=1 // pred_fallthru
      _
    // Predicated region
    $region22: #{tpu_custom_call.1} parent=1 // pred_check
      _
    $region23: #{tpu_custom_call.1} parent=1 // pred_check_branch
      %53 = sbr.rel (0) target = $region25
    $region24: #{tpu_custom_call.1} parent=1 // pred_region
      %55 = dma.done [#allocation8], 64
    $region25: #{tpu_custom_call.1} parent=1 // pred_fallthru
      _
    %vm56 = vcmask 138240
    %57 = vst.msk [vmem:[#allocation2] sm:$0xff] %vm56, 0.0
    %vm58 = vcmask 277640
    %59 = vst.msk [vmem:[#allocation2 + $0x10] sm:$0xff] %vm58, 0.0
    %v60 = vld [vmem:[#allocation4] sm:$0xff]
    %v61 = vld [vmem:[#allocation4 + $0x8] sm:$0xff]
    %64 = vrot.lane.b32.xlu0 %v60, 17
    %v65 = vpop.permute.xlu0 %64
    %66 = vrot.lane.b32.xlu0 %v61, 17
    %v67 = vpop.permute.xlu0 %66
    %v68 = vsel %vm56, %v65, %v67
    %vm72 = vcmask 1047688
    %73 = vst.msk [vmem:[#allocation2] sm:$0xff] %vm72, %v65
    %74 = vst [vmem:[#allocation2 + $0x8] sm:$0xff] %v68
    %75 = vst.msk [vmem:[#allocation2 + $0x10] sm:$0xff] %vm56, %v67
    %v76 = vld [vmem:[#allocation9] ss:$2 sm:$0x3]
    %s77 = scalar_lea.vmem [#allocation9], 1
    %v78 = vld [vmem:[%s77] ss:$2 sm:$0x3]
    %v79 = vld [vmem:[#allocation2] sm:$0xf]
    %v80 = vld [vmem:[#allocation2 + $0x8] sm:$0xf]
    %v82 = vperm.slane %v76, 0
    %v83 = vperm.slane %v76, 1
    %v86 = vmul.f32 %v79, %v82
    %v87 = vmul.f32 %v80, %v83
    %88 = vst [vmem:[#allocation3] sm:$0xf] %v86
    %89 = vst [vmem:[#allocation3 + $0x8] sm:$0xf] %v87
    %v90 = vld [vmem:[#allocation2] sm:$0xf0]
    %v91 = vld [vmem:[#allocation2 + $0x8] sm:$0xf0]
    %v92 = vmul.f32 %v90, %v82
    %v93 = vmul.f32 %v91, %v83
    %v96 = vrot.slane %v92, 4
    %v97 = vrot.slane %v93, 4
    %100 = vst [vmem:[#allocation3 + $0x10] sm:$0xf] %v96
    %101 = vst [vmem:[#allocation3 + $0x18] sm:$0xf] %v97
    %v102 = vld [vmem:[#allocation2] sm:$0xf]
    %v103 = vld [vmem:[#allocation2 + $0x8] sm:$0xf]
    %v104 = vld [vmem:[#allocation2 + $0x10] sm:$0xf]
    %v108 = vrot.slane %v102, 4
    %v109 = vrot.slane %v103, 4
    %v110 = vrot.slane %v104, 4
    %111 = vrot.lane.b32.xlu0 %v108, 127
    %v112 = vpop.permute.xlu0 %111
    %113 = vrot.lane.b32.xlu0 %v109, 127
    %v114 = vpop.permute.xlu0 %113
    %115 = vrot.lane.b32.xlu0 %v110, 127
    %v116 = vpop.permute.xlu0 %115
    %vm117 = vcmask 1039360
    %v118 = vsel %vm117, %v112, %v114
    %v119 = vsel %vm117, %v114, %v116
    %122 = vst [vmem:[#allocation3] sm:$0xf0] %v118
    %123 = vst [vmem:[#allocation3 + $0x8] sm:$0xf0] %v119
    %v124 = vld [vmem:[#allocation2] sm:$0xf0]
    %v125 = vld [vmem:[#allocation2 + $0x8] sm:$0xf0]
    %v126 = vld [vmem:[#allocation2 + $0x10] sm:$0xf0]
    %130 = vrot.lane.b32.xlu0 %v124, 127
    %v131 = vpop.permute.xlu0 %130
    %132 = vrot.lane.b32.xlu0 %v125, 127
    %v133 = vpop.permute.xlu0 %132
    %134 = vrot.lane.b32.xlu0 %v126, 127
    %v135 = vpop.permute.xlu0 %134
    %v136 = vsel %vm117, %v131, %v133
    %v137 = vsel %vm117, %v133, %v135
    %140 = vst [vmem:[#allocation3 + $0x10] sm:$0xf0] %v136
    %141 = vst [vmem:[#allocation3 + $0x18] sm:$0xf0] %v137
    %v142 = vld [vmem:[#allocation2] sm:$0xf]
    %v143 = vld [vmem:[#allocation2 + $0x8] sm:$0xf]
    %v144 = vld [vmem:[#allocation2 + $0x10] sm:$0xf]
    %v146 = vperm.slane %v78, 0
    %v147 = vperm.slane %v78, 1
    %148 = vrot.lane.b32.xlu0 %v146, 2
    %v149 = vpop.permute.xlu0 %148
    %150 = vrot.lane.b32.xlu0 %v147, 2
    %v151 = vpop.permute.xlu0 %150
    %vm152 = vcmask 15360
    %v153 = vsel %vm152, %v149, %v151
    %v157 = vmul.f32 %v142, %v149
    %v158 = vmul.f32 %v143, %v153
    %v159 = vmul.f32 %v144, %v151
    %163 = vrot.lane.b32.xlu0 %v157, 126
    %v164 = vpop.permute.xlu0 %163
    %165 = vrot.lane.b32.xlu0 %v158, 126
    %v166 = vpop.permute.xlu0 %165
    %167 = vrot.lane.b32.xlu0 %v159, 126
    %v168 = vpop.permute.xlu0 %167
    %vm169 = vcmask 1031168
    %v170 = vsel %vm169, %v164, %v166
    %v171 = vsel %vm169, %v166, %v168
    %174 = vst [vmem:[#allocation3 + $0x20] sm:$0xf] %v170
    %175 = vst [vmem:[#allocation3 + $0x28] sm:$0xf] %v171
    %v176 = vld [vmem:[#allocation2] sm:$0xf0]
    %v177 = vld [vmem:[#allocation2 + $0x8] sm:$0xf0]
    %v178 = vld [vmem:[#allocation2 + $0x10] sm:$0xf0]
    %v179 = vmul.f32 %v176, %v149
    %v180 = vmul.f32 %v177, %v153
    %v181 = vmul.f32 %v178, %v151
    %v185 = vrot.slane %v179, 4
    %v186 = vrot.slane %v180, 4
    %v187 = vrot.slane %v181, 4
    %188 = vrot.lane.b32.xlu0 %v185, 126
    %v189 = vpop.permute.xlu0 %188
    %190 = vrot.lane.b32.xlu0 %v186, 126
    %v191 = vpop.permute.xlu0 %190
    %192 = vrot.lane.b32.xlu0 %v187, 126
    %v193 = vpop.permute.xlu0 %192
    %v194 = vsel %vm169, %v189, %v191
    %v195 = vsel %vm169, %v191, %v193
    %198 = vst [vmem:[#allocation3 + $0x30] sm:$0xf] %v194
    %199 = vst [vmem:[#allocation3 + $0x38] sm:$0xf] %v195
    %v200 = vld [vmem:[#allocation2] sm:$0xf]
    %v201 = vld [vmem:[#allocation2 + $0x8] sm:$0xf]
    %v202 = vld [vmem:[#allocation2 + $0x10] sm:$0xf]
    %203 = vrot.lane.b32.xlu0 %v82, 16
    %v204 = vpop.permute.xlu0 %203
    %205 = vrot.lane.b32.xlu0 %v83, 16
    %v206 = vpop.permute.xlu0 %205
    %vm207 = vcmask 130048
    %v208 = vsel %vm207, %v204, %v206
    %v212 = vmul.f32 %v200, %v204
    %v213 = vmul.f32 %v201, %v208
    %v214 = vmul.f32 %v202, %v206
    %v218 = vrot.slane %v212, 4
    %v219 = vrot.slane %v213, 4
    %v220 = vrot.slane %v214, 4
    %221 = vrot.lane.b32.xlu0 %v218, 112
    %v222 = vpop.permute.xlu0 %221
    %223 = vrot.lane.b32.xlu0 %v219, 112
    %v224 = vpop.permute.xlu0 %223
    %225 = vrot.lane.b32.xlu0 %v220, 112
    %v226 = vpop.permute.xlu0 %225
    %vm227 = vcmask 916480
    %v228 = vsel %vm227, %v222, %v224
    %v229 = vsel %vm227, %v224, %v226
    %232 = vst [vmem:[#allocation3 + $0x20] sm:$0xf0] %v228
    %233 = vst [vmem:[#allocation3 + $0x28] sm:$0xf0] %v229
    %v234 = vld [vmem:[#allocation2] sm:$0xf0]
    %v235 = vld [vmem:[#allocation2 + $0x8] sm:$0xf0]
    %v236 = vld [vmem:[#allocation2 + $0x10] sm:$0xf0]
    %v237 = vmul.f32 %v234, %v204
    %v238 = vmul.f32 %v235, %v208
    %v239 = vmul.f32 %v236, %v206
    %243 = vrot.lane.b32.xlu0 %v237, 112
    %v244 = vpop.permute.xlu0 %243
    %245 = vrot.lane.b32.xlu0 %v238, 112
    %v246 = vpop.permute.xlu0 %245
    %247 = vrot.lane.b32.xlu0 %v239, 112
    %v248 = vpop.permute.xlu0 %247
    %v249 = vsel %vm227, %v244, %v246
    %v250 = vsel %vm227, %v246, %v248
    %253 = vst [vmem:[#allocation3 + $0x30] sm:$0xf0] %v249
    %254 = vst [vmem:[#allocation3 + $0x38] sm:$0xf0] %v250
    %v255 = vld [vmem:[#allocation2] sm:$0xf]
    %v256 = vld [vmem:[#allocation2 + $0x8] sm:$0xf]
    %v257 = vld [vmem:[#allocation2 + $0x10] sm:$0xf]
    %261 = vrot.lane.b32.xlu0 %v255, 111
    %v262 = vpop.permute.xlu0 %261
    %263 = vrot.lane.b32.xlu0 %v256, 111
    %v264 = vpop.permute.xlu0 %263
    %265 = vrot.lane.b32.xlu0 %v257, 111
    %v266 = vpop.permute.xlu0 %265
    %vm267 = vcmask 908288
    %v268 = vsel %vm267, %v262, %v264
    %v269 = vsel %vm267, %v264, %v266
    %272 = vst [vmem:[#allocation3 + $0x40] sm:$0xf] %v268
    %273 = vst [vmem:[#allocation3 + $0x48] sm:$0xf] %v269
    %v274 = vld [vmem:[#allocation2] sm:$0xf0]
    %v275 = vld [vmem:[#allocation2 + $0x8] sm:$0xf0]
    %v276 = vld [vmem:[#allocation2 + $0x10] sm:$0xf0]
    %v280 = vrot.slane %v274, 4
    %v281 = vrot.slane %v275, 4
    %v282 = vrot.slane %v276, 4
    %283 = vrot.lane.b32.xlu0 %v280, 111
    %v284 = vpop.permute.xlu0 %283
    %285 = vrot.lane.b32.xlu0 %v281, 111
    %v286 = vpop.permute.xlu0 %285
    %287 = vrot.lane.b32.xlu0 %v282, 111
    %v288 = vpop.permute.xlu0 %287
    %v289 = vsel %vm267, %v284, %v286
    %v290 = vsel %vm267, %v286, %v288
    %293 = vst [vmem:[#allocation3 + $0x50] sm:$0xf] %v289
    %294 = vst [vmem:[#allocation3 + $0x58] sm:$0xf] %v290
    %v295 = vld [vmem:[#allocation2] sm:$0xf]
    %v296 = vld [vmem:[#allocation2 + $0x8] sm:$0xf]
    %v297 = vld [vmem:[#allocation2 + $0x10] sm:$0xf]
    %298 = vrot.lane.b32.xlu0 %v146, 18
    %v299 = vpop.permute.xlu0 %298
    %300 = vrot.lane.b32.xlu0 %v147, 18
    %v301 = vpop.permute.xlu0 %300
    %vm302 = vcmask 146432
    %v303 = vsel %vm302, %v299, %v301
    %v307 = vmul.f32 %v295, %v299
    %v308 = vmul.f32 %v296, %v303
    %v309 = vmul.f32 %v297, %v301
    %v313 = vrot.slane %v307, 4
    %v314 = vrot.slane %v308, 4
    %v315 = vrot.slane %v309, 4
    %316 = vrot.lane.b32.xlu0 %v313, 110
    %v317 = vpop.permute.xlu0 %316
    %318 = vrot.lane.b32.xlu0 %v314, 110
    %v319 = vpop.permute.xlu0 %318
    %320 = vrot.lane.b32.xlu0 %v315, 110
    %v321 = vpop.permute.xlu0 %320
    %vm322 = vcmask 900096
    %v323 = vsel %vm322, %v317, %v319
    %v324 = vsel %vm322, %v319, %v321
    %327 = vst [vmem:[#allocation3 + $0x40] sm:$0xf0] %v323
    %328 = vst [vmem:[#allocation3 + $0x48] sm:$0xf0] %v324
    %v329 = vld [vmem:[#allocation2] sm:$0xf0]
    %v330 = vld [vmem:[#allocation2 + $0x8] sm:$0xf0]
    %v331 = vld [vmem:[#allocation2 + $0x10] sm:$0xf0]
    %v332 = vmul.f32 %v329, %v299
    %v333 = vmul.f32 %v330, %v303
    %v334 = vmul.f32 %v331, %v301
    %338 = vrot.lane.b32.xlu0 %v332, 110
    %v339 = vpop.permute.xlu0 %338
    %340 = vrot.lane.b32.xlu0 %v333, 110
    %v341 = vpop.permute.xlu0 %340
    %342 = vrot.lane.b32.xlu0 %v334, 110
    %v343 = vpop.permute.xlu0 %342
    %v344 = vsel %vm322, %v339, %v341
    %v345 = vsel %vm322, %v341, %v343
    %348 = vst [vmem:[#allocation3 + $0x50] sm:$0xf0] %v344
    %349 = vst [vmem:[#allocation3 + $0x58] sm:$0xf0] %v345
    %v350 = vld [vmem:[#allocation2] sm:$0xf]
    %v351 = vld [vmem:[#allocation2 + $0x8] sm:$0xf]
    %v352 = vld [vmem:[#allocation2 + $0x10] sm:$0xf]
    %353 = vrot.lane.b32.xlu0 %v82, 32
    %v354 = vpop.permute.xlu0 %353
    %355 = vrot.lane.b32.xlu0 %v83, 32
    %v356 = vpop.permute.xlu0 %355
    %vm357 = vcmask 261120
    %v358 = vsel %vm357, %v354, %v356
    %v362 = vmul.f32 %v350, %v354
    %v363 = vmul.f32 %v351, %v358
    %v364 = vmul.f32 %v352, %v356
    %368 = vrot.lane.b32.xlu0 %v362, 96
    %v369 = vpop.permute.xlu0 %368
    %370 = vrot.lane.b32.xlu0 %v363, 96
    %v371 = vpop.permute.xlu0 %370
    %372 = vrot.lane.b32.xlu0 %v364, 96
    %v373 = vpop.permute.xlu0 %372
    %vm374 = vcmask 785408
    %v375 = vsel %vm374, %v369, %v371
    %v376 = vsel %vm374, %v371, %v373
    %379 = vst [vmem:[#allocation3 + $0x60] sm:$0xf] %v375
    %380 = vst [vmem:[#allocation3 + $0x68] sm:$0xf] %v376
    %v381 = vld [vmem:[#allocation2] sm:$0xf0]
    %v382 = vld [vmem:[#allocation2 + $0x8] sm:$0xf0]
    %v383 = vld [vmem:[#allocation2 + $0x10] sm:$0xf0]
    %v384 = vmul.f32 %v381, %v354
    %v385 = vmul.f32 %v382, %v358
    %v386 = vmul.f32 %v383, %v356
    %v390 = vrot.slane %v384, 4
    %v391 = vrot.slane %v385, 4
    %v392 = vrot.slane %v386, 4
    %393 = vrot.lane.b32.xlu0 %v390, 96
    %v394 = vpop.permute.xlu0 %393
    %395 = vrot.lane.b32.xlu0 %v391, 96
    %v396 = vpop.permute.xlu0 %395
    %397 = vrot.lane.b32.xlu0 %v392, 96
    %v398 = vpop.permute.xlu0 %397
    %v399 = vsel %vm374, %v394, %v396
    %v400 = vsel %vm374, %v396, %v398
    %403 = vst [vmem:[#allocation3 + $0x70] sm:$0xf] %v399
    %404 = vst [vmem:[#allocation3 + $0x78] sm:$0xf] %v400
    %v405 = vld [vmem:[#allocation2] sm:$0xf]
    %v406 = vld [vmem:[#allocation2 + $0x8] sm:$0xf]
    %v407 = vld [vmem:[#allocation2 + $0x10] sm:$0xf]
    %v411 = vrot.slane %v405, 4
    %v412 = vrot.slane %v406, 4
    %v413 = vrot.slane %v407, 4
    %414 = vrot.lane.b32.xlu0 %v411, 95
    %v415 = vpop.permute.xlu0 %414
    %416 = vrot.lane.b32.xlu0 %v412, 95
    %v417 = vpop.permute.xlu0 %416
    %418 = vrot.lane.b32.xlu0 %v413, 95
    %v419 = vpop.permute.xlu0 %418
    %vm420 = vcmask 777216
    %v421 = vsel %vm420, %v415, %v417
    %v422 = vsel %vm420, %v417, %v419
    %425 = vst [vmem:[#allocation3 + $0x60] sm:$0xf0] %v421
    %426 = vst [vmem:[#allocation3 + $0x68] sm:$0xf0] %v422
    %v427 = vld [vmem:[#allocation2] sm:$0xf0]
    %v428 = vld [vmem:[#allocation2 + $0x8] sm:$0xf0]
    %v429 = vld [vmem:[#allocation2 + $0x10] sm:$0xf0]
    %433 = vrot.lane.b32.xlu0 %v427, 95
    %v434 = vpop.permute.xlu0 %433
    %435 = vrot.lane.b32.xlu0 %v428, 95
    %v436 = vpop.permute.xlu0 %435
    %437 = vrot.lane.b32.xlu0 %v429, 95
    %v438 = vpop.permute.xlu0 %437
    %v439 = vsel %vm420, %v434, %v436
    %v440 = vsel %vm420, %v436, %v438
    %443 = vst [vmem:[#allocation3 + $0x70] sm:$0xf0] %v439
    %444 = vst [vmem:[#allocation3 + $0x78] sm:$0xf0] %v440
    %v445 = vld [vmem:[#allocation2] sm:$0xf]
    %v446 = vld [vmem:[#allocation2 + $0x8] sm:$0xf]
    %v447 = vld [vmem:[#allocation2 + $0x10] sm:$0xf]
    %448 = vrot.lane.b32.xlu0 %v146, 34
    %v449 = vpop.permute.xlu0 %448
    %450 = vrot.lane.b32.xlu0 %v147, 34
    %v451 = vpop.permute.xlu0 %450
    %vm452 = vcmask 277504
    %v453 = vsel %vm452, %v449, %v451
    %v457 = vmul.f32 %v445, %v449
    %v458 = vmul.f32 %v446, %v453
    %v459 = vmul.f32 %v447, %v451
    %463 = vrot.lane.b32.xlu0 %v457, 94
    %v464 = vpop.permute.xlu0 %463
    %465 = vrot.lane.b32.xlu0 %v458, 94
    %v466 = vpop.permute.xlu0 %465
    %467 = vrot.lane.b32.xlu0 %v459, 94
    %v468 = vpop.permute.xlu0 %467
    %vm469 = vcmask 769024
    %v470 = vsel %vm469, %v464, %v466
    %v471 = vsel %vm469, %v466, %v468
    %474 = vst [vmem:[#allocation3 + $0x80] sm:$0xf] %v470
    %475 = vst [vmem:[#allocation3 + $0x88] sm:$0xf] %v471
    %v476 = vld [vmem:[#allocation2] sm:$0xf0]
    %v477 = vld [vmem:[#allocation2 + $0x8] sm:$0xf0]
    %v478 = vld [vmem:[#allocation2 + $0x10] sm:$0xf0]
    %v479 = vmul.f32 %v476, %v449
    %v480 = vmul.f32 %v477, %v453
    %v481 = vmul.f32 %v478, %v451
    %v485 = vrot.slane %v479, 4
    %v486 = vrot.slane %v480, 4
    %v487 = vrot.slane %v481, 4
    %488 = vrot.lane.b32.xlu0 %v485, 94
    %v489 = vpop.permute.xlu0 %488
    %490 = vrot.lane.b32.xlu0 %v486, 94
    %v491 = vpop.permute.xlu0 %490
    %492 = vrot.lane.b32.xlu0 %v487, 94
    %v493 = vpop.permute.xlu0 %492
    %v494 = vsel %vm469, %v489, %v491
    %v495 = vsel %vm469, %v491, %v493
    %498 = vst [vmem:[#allocation3 + $0x90] sm:$0xf] %v494
    %499 = vst [vmem:[#allocation3 + $0x98] sm:$0xf] %v495
    %v500 = vld [vmem:[#allocation7] sm:$0xff]
    %v501 = vld [vmem:[#allocation3] sm:$0xff]
    %v502 = vld [vmem:[#allocation3 + $0x8] sm:$0xff]
    %v503 = vld [vmem:[#allocation3 + $0x10] sm:$0xff]
    %v504 = vld [vmem:[#allocation3 + $0x18] sm:$0xff]
    %v505 = vld [vmem:[#allocation3 + $0x20] sm:$0xff]
    %v506 = vld [vmem:[#allocation3 + $0x28] sm:$0xff]
    %v507 = vld [vmem:[#allocation3 + $0x30] sm:$0xff]
    %v508 = vld [vmem:[#allocation3 + $0x38] sm:$0xff]
    %v509 = vld [vmem:[#allocation3 + $0x40] sm:$0xff]
    %v510 = vld [vmem:[#allocation3 + $0x48] sm:$0xff]
    %v511 = vld [vmem:[#allocation3 + $0x50] sm:$0xff]
    %v512 = vld [vmem:[#allocation3 + $0x58] sm:$0xff]
    %v513 = vld [vmem:[#allocation3 + $0x60] sm:$0xff]
    %v514 = vld [vmem:[#allocation3 + $0x68] sm:$0xff]
    %v515 = vld [vmem:[#allocation3 + $0x70] sm:$0xff]
    %v516 = vld [vmem:[#allocation3 + $0x78] sm:$0xff]
    %v517 = vld [vmem:[#allocation3 + $0x80] sm:$0xf]
    %v518 = vld [vmem:[#allocation3 + $0x88] sm:$0xf]
    %v519 = vld [vmem:[#allocation3 + $0x90] sm:$0xf]
    %v520 = vld [vmem:[#allocation3 + $0x98] sm:$0xf]
    %vm521 = vcmask 293888
    %v523 = vsel %vm521, %v500, 0
    %vm525 = vcmask 1043456
    %v527 = vsel %vm525, %v517, 0
    %v530 = vsel %vm525, %v518, 0
    %v533 = vsel %vm525, %v519, 0
    %v536 = vsel %vm525, %v520, 0
    %538 = vmatpush.msra.mxu0 0.0
    %539 = vmatpush.msra.mxu0 0.0
    %540 = vmatpush.msra.mxu0 0.0
    %541 = vmatpush.msra.mxu0 0.0
    %542 = vmatpush.msra.mxu0 0.0
    %543 = vmatpush.msra.mxu0 0.0
    %544 = vmatpush.msra.mxu0 0.0
    %545 = vmatpush.msra.mxu0 0.0
    %546 = vmatpush.msra.mxu0 0.0
    %547 = vmatpush.msra.mxu0 0.0
    %548 = vmatpush.msra.mxu0 0.0
    %549 = vmatpush.msra.mxu0 %v527
    %550 = vmatpush.msra.mxu0 %v513
    %551 = vmatpush.msra.mxu0 %v509
    %552 = vmatpush.msra.mxu0 %v505
    %553 = vmatpush.msra.mxu0 %v501
    %554 = vmatmul.f32.gmra.mxu0 %v523
    %v555 = vpop.f32.mrf.mxu0
    %v556 = vadd.f32 0.0, %v555
    %557 = vdwg.mxu0
    %558 = vmatpush.msra.mxu0 0.0
    %559 = vmatpush.msra.mxu0 0.0
    %560 = vmatpush.msra.mxu0 0.0
    %561 = vmatpush.msra.mxu0 0.0
    %562 = vmatpush.msra.mxu0 0.0
    %563 = vmatpush.msra.mxu0 0.0
    %564 = vmatpush.msra.mxu0 0.0
    %565 = vmatpush.msra.mxu0 0.0
    %566 = vmatpush.msra.mxu0 0.0
    %567 = vmatpush.msra.mxu0 0.0
    %568 = vmatpush.msra.mxu0 0.0
    %569 = vmatpush.msra.mxu0 %v530
    %570 = vmatpush.msra.mxu0 %v514
    %571 = vmatpush.msra.mxu0 %v510
    %572 = vmatpush.msra.mxu0 %v506
    %573 = vmatpush.msra.mxu0 %v502
    %574 = vmatmul.f32.gmra.mxu0 %v523
    %v575 = vpop.f32.mrf.mxu0
    %v576 = vadd.f32 0.0, %v575
    %577 = vdwg.mxu0
    %578 = vmatpush.msra.mxu0 0.0
    %579 = vmatpush.msra.mxu0 0.0
    %580 = vmatpush.msra.mxu0 0.0
    %581 = vmatpush.msra.mxu0 0.0
    %582 = vmatpush.msra.mxu0 0.0
    %583 = vmatpush.msra.mxu0 0.0
    %584 = vmatpush.msra.mxu0 0.0
    %585 = vmatpush.msra.mxu0 0.0
    %586 = vmatpush.msra.mxu0 0.0
    %587 = vmatpush.msra.mxu0 0.0
    %588 = vmatpush.msra.mxu0 0.0
    %589 = vmatpush.msra.mxu0 %v533
    %590 = vmatpush.msra.mxu0 %v515
    %591 = vmatpush.msra.mxu0 %v511
    %592 = vmatpush.msra.mxu0 %v507
    %593 = vmatpush.msra.mxu0 %v503
    %594 = vmatmul.f32.gmra.mxu0 %v523
    %v595 = vpop.f32.mrf.mxu0
    %v596 = vadd.f32 0.0, %v595
    %597 = vdwg.mxu0
    %598 = vmatpush.msra.mxu0 0.0
    %599 = vmatpush.msra.mxu0 0.0
    %600 = vmatpush.msra.mxu0 0.0
    %601 = vmatpush.msra.mxu0 0.0
    %602 = vmatpush.msra.mxu0 0.0
    %603 = vmatpush.msra.mxu0 0.0
    %604 = vmatpush.msra.mxu0 0.0
    %605 = vmatpush.msra.mxu0 0.0
    %606 = vmatpush.msra.mxu0 0.0
    %607 = vmatpush.msra.mxu0 0.0
    %608 = vmatpush.msra.mxu0 0.0
    %609 = vmatpush.msra.mxu0 %v536
    %610 = vmatpush.msra.mxu0 %v516
    %611 = vmatpush.msra.mxu0 %v512
    %612 = vmatpush.msra.mxu0 %v508
    %613 = vmatpush.msra.mxu0 %v504
    %614 = vmatmul.f32.gmra.mxu0 %v523
    %v615 = vpop.f32.mrf.mxu0
    %v616 = vadd.f32 0.0, %v615
    %617 = vdwg.mxu0
    %v618 = vmin.f32 %v556, 0.0
    %v619 = vmin.f32 %v576, 0.0
    %v620 = vmin.f32 %v596, 0.0
    %v621 = vmin.f32 %v616, 0.0
    %v622 = vmul.f32 %v618, 1.442695
    %v623 = vpow.pop %v622
    %v624 = vmul.f32 %v619, 1.442695
    %v625 = vpow.pop %v624
    %v626 = vmul.f32 %v620, 1.442695
    %v627 = vpow.pop %v626
    %v628 = vmul.f32 %v621, 1.442695
    %v629 = vpow.pop %v628
    %v630 = vsub.f32 %v623, 1.0
    %v631 = vsub.f32 %v625, 1.0
    %v632 = vsub.f32 %v627, 1.0
    %v633 = vsub.f32 %v629, 1.0
    %vm634 = vcmp.gt.f32.partialorder %v556, 0.0
    %vm635 = vcmp.gt.f32.partialorder %v576, 0.0
    %vm636 = vcmp.gt.f32.partialorder %v596, 0.0
    %vm637 = vcmp.gt.f32.partialorder %v616, 0.0
    %v638 = vsel %vm634, %v556, %v630
    %v639 = vsel %vm635, %v576, %v631
    %v640 = vsel %vm636, %v596, %v632
    %v641 = vsel %vm637, %v616, %v633
    %642 = vst [vmem:[#allocation10] sm:$0xff] %v638
    %643 = vst [vmem:[#allocation10 + $0x8] sm:$0xff] %v639
    %644 = vst [vmem:[#allocation10 + $0x10] sm:$0xff] %v640
    %645 = vst [vmem:[#allocation10 + $0x18] sm:$0xff] %v641
    // Predicated region
    $region26: #{tpu_custom_call.1} parent=1 // pred_check
      _
    $region27: #{tpu_custom_call.1} parent=1 // pred_check_branch
      %647 = sbr.rel (0) target = $region29
    $region28: #{tpu_custom_call.1} parent=1 // pred_region
      %649 = vsyncadd [#allocation6], 0
      %s650 = sshll.u32 [#allocation10], 4
      %s651 = int_to_ptr.vmem [resolvable:$true] %s650
      %s652 = sshll.u32 %s3, 4
      %s653 = int_to_ptr.hbm [resolvable:$true] %s652
      %658 = dma.vmem_to_hbm [thread:$0]  %s651, 512, %s653, [#allocation6], 256, 256, 16
    $region29: #{tpu_custom_call.1} parent=1 // pred_fallthru
      _
    // Predicated region
    $region30: #{tpu_custom_call.1} parent=1 // pred_check
      _
    $region31: #{tpu_custom_call.1} parent=1 // pred_check_branch
      %660 = sbr.rel (0) target = $region33
    $region32: #{tpu_custom_call.1} parent=1 // pred_region
      %662 = dma.done [#allocation6], 512
    $region33: #{tpu_custom_call.1} parent=1 // pred_fallthru
      _
    %663 = vsyncpa [#allocation5], 1
    %664 = vsyncpa [#allocation8], 1
    %665 = vsyncpa [#allocation6], 1

</llo_original>
